<compile_context>
chip_gen: v7x
topology: tpu7x:2x2x1
jax: 0.10.0
libtpu: 0.0.40
codegen_flags: <defaults>
</compile_context>

<pallas_src>
import jax
import jax.numpy as jnp
from jax import lax
from jax.experimental import pallas as pl
from jax.experimental.pallas import tpu as pltpu


def _round_up(x, m):
    return (x + m - 1) // m * m


def _choose_bt(B):
    """Batch tile. Keep >= 2 steps along the (parallel) batch axis when B >= 2 so v7x's two
    TensorCores both get work; on single-TC v5e/v6e the extra grid steps cost ~0.35 us each,
    negligible for this bandwidth-bound kernel."""
    if B <= 1:
        return 1
    best = 1
    for bt in range(1, min(8, B // 2) + 1):
        if B % bt == 0:
            best = bt
    return best


def _largest_divisor_leq(m, cap):
    cap = max(1, min(cap, m))
    for d in range(cap, 0, -1):
        if m % d == 0:
            return d
    return 1


def _wp_kernel_direct(a_ref, f_ref, o_ref):
    # a_ref: (bt, Q, tk), f_ref: (bt, C, tk), o_ref: (bt, Q, C) f32, resident across the K axis.
    k = pl.program_id(2)

    @pl.when(k == 0)
    def _init():
        o_ref[...] = jnp.zeros_like(o_ref)

    o_ref[...] += lax.dot_general(
        a_ref[...], f_ref[...],
        dimension_numbers=(((2,), (2,)), ((0,), (0,))),
        preferred_element_type=jnp.float32,
    )


def _wp_kernel_scratch(a_ref, f_ref, o_ref, acc_ref):
    # Non-f32 output: accumulate in f32 scratch, cast once on the last K step.
    k = pl.program_id(2)

    @pl.when(k == 0)
    def _init():
        acc_ref[...] = jnp.zeros_like(acc_ref)

    acc_ref[...] += lax.dot_general(
        a_ref[...], f_ref[...],
        dimension_numbers=(((2,), (2,)), ((0,), (0,))),
        preferred_element_type=jnp.float32,
    )

    @pl.when(k == pl.num_programs(2) - 1)
    def _store():
        o_ref[...] = acc_ref[...].astype(o_ref.dtype)


def wp_forward(F, A, *, use_bf16=None, tk_max=8192, bt=None):
    """Pallas implementation of WP.forward.

    F: (B, C, H, W), A: (B, Q, H, W)
    returns F_P: (B, Q, C)  (== torch.bmm(A.view(B,Q,HW), F.view(B,C,HW).permute(0,2,1)))
    """
    B, C, H, W = F.shape
    Bq, Q, Ha, Wa = A.shape
    assert B == Bq and H == Ha and W == Wa
    HW = H * W

    out_dtype = jnp.result_type(F.dtype, A.dtype)
    # bf16 inputs halve HBM traffic; auto-enabled only when the inputs are already bf16 so the
    # f32 default stays bit-comparable with the torch.bmm reference. Accumulation is always f32.
    if use_bf16 is None:
        use_bf16 = (F.dtype == jnp.bfloat16) and (A.dtype == jnp.bfloat16)
    compute_dtype = jnp.bfloat16 if use_bf16 else out_dtype
    in_itemsize = jnp.dtype(compute_dtype).itemsize
    out_itemsize = jnp.dtype(out_dtype).itemsize

    if bt is None:
        bt = _choose_bt(B)
    assert B % bt == 0

    # K (= H*W) tiling: pad HW only to the next multiple of 128 (zero copies when already
    # aligned), then pick tk as the largest multiple of 128 dividing the padded length,
    # capped by tk_max and a VMEM budget (tk is always a multiple of 128 by construction).
    hwp = _round_up(HW, 128)
    m = hwp // 128
    qp8 = _round_up(Q, 8)
    cp8 = _round_up(C, 8)
    d_max = max(1, int(tk_max) // 128)
    per128_bytes = 2 * bt * (qp8 + cp8) * 128 * in_itemsize      # double-buffered A+F per 128 K cols
    d_vmem = max(1, (24 * 1024 * 1024) // per128_bytes)          # keep inputs <= ~24 MiB (v7x: 64 MiB/TC)
    d_cap = min(d_max, d_vmem)

    # v7x fallback when B == 1: split K across two parallel partitions so both TensorCores work.
    P = 1
    d = None
    if B == 1:
        for cand in range(min(d_cap, m), 0, -1):
            if m % cand == 0 and (m // cand) % 2 == 0:
                d = cand
                P = 2
                break
    if d is None:
        d = _largest_divisor_leq(m, d_cap)
    tk = 128 * d
    kt = m // d
    ktp = kt // P

    A_flat = A.reshape(B, Q, HW).astype(compute_dtype)
    F_flat = F.reshape(B, C, HW).astype(compute_dtype)
    if hwp != HW:
        A_flat = jnp.pad(A_flat, ((0, 0), (0, 0), (0, hwp - HW)))
        F_flat = jnp.pad(F_flat, ((0, 0), (0, 0), (0, hwp - HW)))

    grid = (P, B // bt, ktp)  # (K-partition, batch) parallel; K reduction last & arbitrary

    use_scratch = out_dtype != jnp.float32
    kernel = _wp_kernel_scratch if use_scratch else _wp_kernel_direct
    scratch_shapes = [pltpu.VMEM((bt, Q, C), jnp.float32)] if use_scratch else []

    grid_spec = pltpu.PrefetchScalarGridSpec(
        num_scalar_prefetch=0,
        grid=grid,
        in_specs=[
            pl.BlockSpec((bt, Q, tk), lambda p, b, k: (b, 0, p * ktp + k)),   # A K-tile
            pl.BlockSpec((bt, C, tk), lambda p, b, k: (b, 0, p * ktp + k)),   # F K-tile
        ],
        # Leading partition dim squeezed; (Q, C) are full-extent so no (8,128) padding needed.
        out_specs=pl.BlockSpec((None, bt, Q, C), lambda p, b, k: (p, b, 0, 0)),
        scratch_shapes=scratch_shapes,
    )

    cost = pl.CostEstimate(
        flops=2 * B * Q * C * HW,
        transcendentals=0,
        bytes_accessed=int((A_flat.size + F_flat.size) * in_itemsize
                           + P * B * Q * C * out_itemsize),
    )

    # Corrected VMEM accounting (no double-counting): double-buffered input tiles +
    # double-buffered output block (+ f32 scratch when used); sized against v7x's 64 MiB/TC.
    cl128 = _round_up(C, 128)
    vmem_need = 2 * bt * (qp8 + cp8) * tk * in_itemsize
    vmem_need += 2 * bt * qp8 * cl128 * out_itemsize
    if use_scratch:
        vmem_need += bt * qp8 * cl128 * 4
    vmem_limit = int(min(56 * 1024 * 1024, max(32 * 1024 * 1024, 2 * vmem_need)))

    out = pl.pallas_call(
        kernel,
        out_shape=jax.ShapeDtypeStruct((P, B, Q, C), out_dtype),
        grid_spec=grid_spec,
        compiler_params=pltpu.CompilerParams(
            dimension_semantics=("parallel", "parallel", "arbitrary"),
            vmem_limit_bytes=vmem_limit,
        ),
        cost_estimate=cost,
    )(A_flat, F_flat)

    if P == 1:
        return out[0]
    # Combine K-partition partial sums (f32 to avoid extra bf16 rounding), restore out dtype.
    return out.astype(jnp.float32).sum(axis=0).astype(out_dtype)


if __name__ == "__main__":
    key = jax.random.PRNGKey(0)
    kF, kA = jax.random.split(key)

    B, C, H, W = 2, 4, 16, 16
    Q = 8

    F_in = jax.random.normal(kF, (B, C, H, W), dtype=jnp.float32)
    A_in = jax.random.normal(kA, (B, Q, H, W), dtype=jnp.float32)

    # Main path (f32, direct-accumulate kernel, no pads).
    out = jax.block_until_ready(wp_forward(F_in, A_in))
    ref = jnp.einsum(
        "bqn,bcn->bqc",
        A_in.reshape(B, Q, H * W),
        F_in.reshape(B, C, H * W),
    )
    assert out.shape == (B, Q, C)
    assert jnp.allclose(out, ref, atol=1e-4, rtol=1e-4)

    # B == 1 path: K split across two parallel partitions (v7x megacore fallback).
    out1 = jax.block_until_ready(wp_forward(F_in[:1], A_in[:1], tk_max=128))
    assert out1.shape == (1, Q, C)
    assert jnp.allclose(out1, ref[:1], atol=1e-4, rtol=1e-4)

    # bf16-input path (f32-scratch kernel); loose tolerance vs the f32 reference.
    out_bf = jax.block_until_ready(
        wp_forward(F_in.astype(jnp.bfloat16), A_in.astype(jnp.bfloat16)))
    assert out_bf.shape == (B, Q, C) and out_bf.dtype == jnp.bfloat16
    assert jnp.allclose(out_bf.astype(jnp.float32), ref, atol=1.0, rtol=0.1)

    print("KERNEL_OK")
</pallas_src>

<mosaic_0001>
module attributes {stable_mosaic.version = 11 : i64} {
  func.func @_wp_kernel_direct(%arg0: i32, %arg1: i32, %arg2: i32, %arg3: memref<1x8x256xf32, #tpu.memory_space<vmem>>, %arg4: memref<1x4x256xf32, #tpu.memory_space<vmem>>, %arg5: memref<1x1x8x4xf32, #tpu.memory_space<vmem>>) attributes {dimension_semantics = [#tpu.dimension_semantics<parallel>, #tpu.dimension_semantics<parallel>, #tpu.dimension_semantics<arbitrary>], iteration_bounds = array<i64: 1, 2, 1>, scalar_prefetch = 0 : i64, scratch_operands = 0 : i64, tpu.core_type = #tpu.core_type<tc>, window_params = [{transform_indices = @transform_0, window_bounds = array<i64: 1, 8, 256>}, {transform_indices = @transform_1, window_bounds = array<i64: 1, 4, 256>}, {transform_indices = @transform_2, window_bounds = array<i64: 1, 1, 8, 4>}]} {
    %c0_i32 = arith.constant 0 : i32
    %0 = arith.cmpi eq, %arg2, %c0_i32 : i32
    %1 = arith.extui %0 : i1 to i32
    %c0_i32_0 = arith.constant 0 : i32
    %2 = arith.cmpi ne, %1, %c0_i32_0 : i32
    scf.if %2 {
      %cst_14 = arith.constant 0.000000e+00 : f32
      %12 = vector.broadcast %cst_14 : f32 to vector<1x8x4xf32>
      %c0_15 = arith.constant 0 : index
      %c0_16 = arith.constant 0 : index
      %c0_17 = arith.constant 0 : index
      %c0_18 = arith.constant 0 : index
      %13 = vector.load %arg5[%c0_15, %c0_16, %c0_17, %c0_18] : memref<1x1x8x4xf32, #tpu.memory_space<vmem>>, vector<1x1x8x4xf32>
      %14 = vector.shape_cast %13 : vector<1x1x8x4xf32> to vector<1x8x4xf32>
      %15 = vector.shape_cast %12 : vector<1x8x4xf32> to vector<1x1x8x4xf32>
      tpu.vector_store %arg5[%c0_15, %c0_16, %c0_17, %c0_18], %15 {strides = array<i32>} : memref<1x1x8x4xf32, #tpu.memory_space<vmem>>, vector<1x1x8x4xf32>,
    } else {
    }
    %c0 = arith.constant 0 : index
    %c0_1 = arith.constant 0 : index
    %c0_2 = arith.constant 0 : index
    %c0_3 = arith.constant 0 : index
    %3 = vector.load %arg5[%c0, %c0_1, %c0_2, %c0_3] : memref<1x1x8x4xf32, #tpu.memory_space<vmem>>, vector<1x1x8x4xf32>
    %4 = vector.shape_cast %3 : vector<1x1x8x4xf32> to vector<1x8x4xf32>
    %c0_4 = arith.constant 0 : index
    %c0_5 = arith.constant 0 : index
    %c0_6 = arith.constant 0 : index
    %5 = vector.load %arg3[%c0_4, %c0_5, %c0_6] : memref<1x8x256xf32, #tpu.memory_space<vmem>>, vector<1x8x256xf32>
    %c0_7 = arith.constant 0 : index
    %c0_8 = arith.constant 0 : index
    %c0_9 = arith.constant 0 : index
    %6 = vector.load %arg4[%c0_7, %c0_8, %c0_9] : memref<1x4x256xf32, #tpu.memory_space<vmem>>, vector<1x4x256xf32>
    %cst = arith.constant dense<0.000000e+00> : vector<1x8x4xf32>
    %7 = tpu.matmul %5, %6, %cst {dimension_numbers = #tpu.dot_dimension_numbers<[2], [2], [1], [1], [0, 0, 0, 1, 1, 1], [0], [0]>} : vector<1x8x256xf32>, vector<1x4x256xf32>, vector<1x8x4xf32> -> vector<1x8x4xf32>
    %8 = arith.addf %4, %7 : vector<1x8x4xf32>
    %c0_10 = arith.constant 0 : index
    %c0_11 = arith.constant 0 : index
    %c0_12 = arith.constant 0 : index
    %c0_13 = arith.constant 0 : index
    %9 = vector.load %arg5[%c0_10, %c0_11, %c0_12, %c0_13] : memref<1x1x8x4xf32, #tpu.memory_space<vmem>>, vector<1x1x8x4xf32>
    %10 = vector.shape_cast %9 : vector<1x1x8x4xf32> to vector<1x8x4xf32>
    %11 = vector.shape_cast %8 : vector<1x8x4xf32> to vector<1x1x8x4xf32>
    tpu.vector_store %arg5[%c0_10, %c0_11, %c0_12, %c0_13], %11 {strides = array<i32>} : memref<1x1x8x4xf32, #tpu.memory_space<vmem>>, vector<1x1x8x4xf32>,
    return
  }
  func.func @transform_0(%arg0: i32, %arg1: i32, %arg2: i32) -> (i32, i32, i32) {
    %c1_i32 = arith.constant 1 : i32
    %0 = arith.muli %arg0, %c1_i32 : i32
    %1 = arith.addi %0, %arg2 : i32
    %c0_i32 = arith.constant 0 : i32
    %c0_i32_0 = arith.constant 0 : i32
    return %arg1, %c0_i32, %1 : i32, i32, i32
  }
  func.func @transform_1(%arg0: i32, %arg1: i32, %arg2: i32) -> (i32, i32, i32) {
    %c1_i32 = arith.constant 1 : i32
    %0 = arith.muli %arg0, %c1_i32 : i32
    %1 = arith.addi %0, %arg2 : i32
    %c0_i32 = arith.constant 0 : i32
    %c0_i32_0 = arith.constant 0 : i32
    return %arg1, %c0_i32, %1 : i32, i32, i32
  }
  func.func @transform_2(%arg0: i32, %arg1: i32, %arg2: i32) -> (i32, i32, i32, i32) {
    %c0_i32 = arith.constant 0 : i32
    %c0_i32_0 = arith.constant 0 : i32
    %c0_i32_1 = arith.constant 0 : i32
    return %arg0, %arg1, %c0_i32, %c0_i32_0 : i32, i32, i32, i32
  }
}

</mosaic_0001>

<llo_original>
// kernel: tpu_custom_call.1
$region0: #{tpu_custom_call.1}
  #allocation0 [shape = 'u32[]', space=smem, size = 0x4, offset = 0x4, fixed_abs, tag = 'smem constant byte address 0x4 - core index']
  #allocation1 [shape = 'u32[144,128]{1,0:T(1,128)}', space=vmem, size = 0x12000, scoped, tag = 'internal scratch']
  %s0 = inlined_call_operand.hbm [shape: f32[2,8,256], index: 0, kind: input, shape index: {}]
  %s1 = inlined_call_operand.hbm [shape: f32[2,4,256], index: 1, kind: input, shape index: {}]
  %s2 = inlined_call_operand.vmem [shape: f32[1,2,8,4], index: 2, kind: output, shape index: {}]
  %s3 = sld [smem:[#allocation0]]
  $region53: #{tpu_custom_call.1} parent=0
    _
  %s5 = ssub.s32 1, %s3
  %s6 = scalar_select 0, %s5, %s3
  $region1: #{tpu_custom_call.1} parent=0
    #allocation2 [shape = 'u8[16384]{0}', space=vmem, size = 0x4000, scoped, tag = 'input window, operand 0']
    #allocation3 [shape = 's32[2]{0}', space=sflag, size = 0x8, scoped, tag = 'scoped memory for tpu_custom_call.1']
    #allocation4 [shape = 'u8[8192]{0}', space=vmem, size = 0x2000, scoped, tag = 'input window, operand 1']
    #allocation5 [shape = 's32[2]{0}', space=sflag, size = 0x8, scoped, tag = 'scoped memory for tpu_custom_call.1']
    %7 = vsyncpa [#allocation3], 0
    %s8 = scalar_lea.sflag [#allocation3], 1
    %9 = vsyncpa %s8, 0
    %10 = vsyncpa [#allocation5], 0
    %s11 = scalar_lea.sflag [#allocation5], 1
    %12 = vsyncpa %s11, 0
    loop: start=0, step=1, limit=4
    $region2: #{tpu_custom_call.1} parent=1 // loop_pre_header
      _
    $region3: #{tpu_custom_call.1} parent=1 // loop_header
      %s14 = sphi 0, %s18
      %p15 = scmp.ge.s32.totalorder %s14, 4
      %s21 = sphi 0, %s40
      %s22 = sphi 0, %s36
      %s23 = sphi 0, %s32
      %s24 = sphi 0, %s21
      %s25 = sphi 0, %s22
      %s26 = sphi 0, %s23
      %s27 = sphi 0, %s24
      %s28 = sphi 0, %s25
      %s29 = sphi 0, %s26
      %s47 = sphi 0, %s49
      %s50 = sphi 0, %s47
      %s51 = sphi 0, %s50
      %s67 = sphi 0, %s51
      %s77 = sphi 0, %s79
      %s80 = sphi 0, %s77
      %s81 = sphi 0, %s80
      %s97 = sphi 0, %s81
      %s105 = sphi 0, %s107
      %s108 = sphi 0, %s105
      %s109 = sphi 0, %s108
      %s125 = sphi 0, %s109
    $region4: #{tpu_custom_call.1} parent=1 // loop_header_branch
      %17 = sbr.rel (%p15) target = $region8
    $region5: #{tpu_custom_call.1} parent=1 // loop_body
      %s19 = ssub.s32 %s14, 1
      %s20 = ssub.s32 %s14, 2
      %s30 = sadd.s32 1, %s23
      %p31 = scmp.ge.s32.totalorder %s30, 1
      %s32 = scalar_select %p31, 0, %s30
      %s33 = sadd.s32 1, %s22
      %s34 = scalar_select %p31, %s33, %s22
      %p35 = scmp.ge.s32.totalorder %s34, 2
      %s36 = scalar_select %p35, 0, %s34
      %s37 = sadd.s32 1, %s21
      %s38 = scalar_select %p35, %s37, %s21
      %p39 = scmp.ge.s32.totalorder %s38, 1
      %s40 = scalar_select %p39, 0, %s38
      %s41 = sadd.s32 %s21, %s23
      %s42 = sadd.s32 %s40, %s32
      %s43 = ssub.s32 %s22, %s36
      %s44 = ssub.s32 %s41, %s42
      %s45 = sor.u32 %s43, %s44
      %p46 = scmp.eq.s32.totalorder %s45, 0
      %s48 = sadd.s32 %s47, 1
      %s49 = scalar_select %p46, %s47, %s48
      %p52 = pneg %p46
      %p53 = scmp.eq.s32.totalorder %s14, 1
      %p54 = por %p52, %p53
      %p55 = scmp.ne.s32.totalorder %s47, %s50
      %p56 = scmp.eq.s32.totalorder %s14, 0
      %p57 = por %p55, %p56
      %p58 = scmp.ne.s32.totalorder %s47, %s50
      %p59 = scmp.eq.s32.totalorder %s19, 1
      %p60 = por %p58, %p59
      %p61 = scmp.ne.s32.totalorder %s50, %s51
      %p62 = scmp.eq.s32.totalorder %s19, 0
      %p63 = por %p61, %p62
      %p64 = scmp.ne.s32.totalorder %s50, %s51
      %p65 = scmp.eq.s32.totalorder %s20, 1
      %p66 = por %p64, %p65
      %p68 = scmp.ne.s32.totalorder %s51, %s67
      %p69 = scmp.eq.s32.totalorder %s20, 0
      %p70 = por %p68, %p69
      %s71 = sadd.s32 %s21, %s23
      %s72 = sadd.s32 %s40, %s32
      %s73 = ssub.s32 %s22, %s36
      %s74 = ssub.s32 %s71, %s72
      %s75 = sor.u32 %s73, %s74
      %p76 = scmp.eq.s32.totalorder %s75, 0
      %s78 = sadd.s32 %s77, 1
      %s79 = scalar_select %p76, %s77, %s78
      %p82 = pneg %p76
      %p83 = scmp.eq.s32.totalorder %s14, 1
      %p84 = por %p82, %p83
      %p85 = scmp.ne.s32.totalorder %s77, %s80
      %p86 = scmp.eq.s32.totalorder %s14, 0
      %p87 = por %p85, %p86
      %p88 = scmp.ne.s32.totalorder %s77, %s80
      %p89 = scmp.eq.s32.totalorder %s19, 1
      %p90 = por %p88, %p89
      %p91 = scmp.ne.s32.totalorder %s80, %s81
      %p92 = scmp.eq.s32.totalorder %s19, 0
      %p93 = por %p91, %p92
      %p94 = scmp.ne.s32.totalorder %s80, %s81
      %p95 = scmp.eq.s32.totalorder %s20, 1
      %p96 = por %p94, %p95
      %p98 = scmp.ne.s32.totalorder %s81, %s97
      %p99 = scmp.eq.s32.totalorder %s20, 0
      %p100 = por %p98, %p99
      %s101 = ssub.s32 %s21, %s40
      %s102 = ssub.s32 %s22, %s36
      %s103 = sor.u32 %s101, %s102
      %p104 = scmp.eq.s32.totalorder %s103, 0
      %s106 = sadd.s32 %s105, 1
      %s107 = scalar_select %p104, %s105, %s106
      %p110 = pneg %p104
      %p111 = scmp.eq.s32.totalorder %s14, 1
      %p112 = por %p110, %p111
      %p113 = scmp.ne.s32.totalorder %s105, %s108
      %p114 = scmp.eq.s32.totalorder %s14, 0
      %p115 = por %p113, %p114
      %p116 = scmp.ne.s32.totalorder %s105, %s108
      %p117 = scmp.eq.s32.totalorder %s19, 1
      %p118 = por %p116, %p117
      %p119 = scmp.ne.s32.totalorder %s108, %s109
      %p120 = scmp.eq.s32.totalorder %s19, 0
      %p121 = por %p119, %p120
      %p122 = scmp.ne.s32.totalorder %s108, %s109
      %p123 = scmp.eq.s32.totalorder %s20, 1
      %p124 = por %p122, %p123
      %p126 = scmp.ne.s32.totalorder %s109, %s125
      %p127 = scmp.eq.s32.totalorder %s20, 0
      %p128 = por %p126, %p127
      %p129 = scmp.le.s32.totalorder 1, %s14
      %p130 = scmp.lt.s32.totalorder %s14, 3
      %p131 = pnand %p129, %p130
      %p132 = pneg %p131
      // Predicated region
      $region9: #{tpu_custom_call.1} parent=5 // pred_check
        _
      $region10: #{tpu_custom_call.1} parent=5 // pred_check_branch
        %134 = sbr.rel (%p131) target = $region12
      $region11: #{tpu_custom_call.1} parent=5 // pred_region
        %s135 = ssub.s32 %s14, 1
      $region12: #{tpu_custom_call.1} parent=5 // pred_fallthru
        _
      %p136 = scmp.lt.s32.totalorder %s14, 2
      // Predicated region
      $region13: #{tpu_custom_call.1} parent=5 // pred_check
        %p137 = pneg %p136
      $region14: #{tpu_custom_call.1} parent=5 // pred_check_branch
        %139 = sbr.rel (%p137) target = $region16
      $region15: #{tpu_custom_call.1} parent=5 // pred_region
        // Predicated region
        $region17: #{tpu_custom_call.1} parent=15 // pred_check
          %p140 = pneg %p57
        $region18: #{tpu_custom_call.1} parent=15 // pred_check_branch
          %142 = sbr.rel (%p140) target = $region20
        $region19: #{tpu_custom_call.1} parent=15 // pred_region
          %s143 = sand.u32 %s47, 1
          %s144 = scalar_lea.sflag [#allocation3], %s143
          %s145 = sand.u32 %s47, 1
          %s146 = smul.addr %s145, 16
          %s147 = scalar_lea.vmem [#allocation2], %s146
          %s148 = sadd.s32 %s21, %s23
          %s149 = smul.u32 2, %s148
          %s151 = ssub.s32 256, 256
          %152 = vsyncadd %s144, %s151
          %s153 = smul.addr %s22, 2
          %s154 = sadd.s32 %s149, %s153
          %s155 = smul.addr %s154, 128
          %s156 = scalar_lea.hbm %s0, %s155
          %s158 = sshll.u32 %s147, 4
          %s159 = int_to_ptr.vmem [resolvable:$true] %s158
          %161 = dma.hbm_to_vmem [thread:$0]  %s156, 256, %s159, %s144
        $region20: #{tpu_custom_call.1} parent=15 // pred_fallthru
          _
        // Predicated region
        $region21: #{tpu_custom_call.1} parent=15 // pred_check
          %p162 = pneg %p87
        $region22: #{tpu_custom_call.1} parent=15 // pred_check_branch
          %164 = sbr.rel (%p162) target = $region24
        $region23: #{tpu_custom_call.1} parent=15 // pred_region
          %s165 = sand.u32 %s77, 1
          %s166 = scalar_lea.sflag [#allocation5], %s165
          %s167 = sand.u32 %s77, 1
          %s168 = smul.addr %s167, 8
          %s169 = scalar_lea.vmem [#allocation4], %s168
          %s170 = sadd.s32 %s21, %s23
          %s171 = smul.u32 2, %s170
          %s173 = ssub.s32 128, 128
          %174 = vsyncadd %s166, %s173
          %s175 = smul.addr %s22, 2
          %s176 = sadd.s32 %s171, %s175
          %s177 = smul.addr %s176, 64
          %s178 = scalar_lea.hbm %s1, %s177
          %s180 = sshll.u32 %s169, 4
          %s181 = int_to_ptr.vmem [resolvable:$true] %s180
          %183 = dma.hbm_to_vmem [thread:$0]  %s178, 128, %s181, %s166
        $region24: #{tpu_custom_call.1} parent=15 // pred_fallthru
          _
      $region16: #{tpu_custom_call.1} parent=5 // pred_fallthru
        _
      %p184 = scmp.le.s32.totalorder 1, %s14
      %p185 = scmp.lt.s32.totalorder %s14, 3
      %p186 = pnand %p184, %p185
      %p187 = pneg %p186
      // Predicated region
      $region25: #{tpu_custom_call.1} parent=5 // pred_check
        _
      $region26: #{tpu_custom_call.1} parent=5 // pred_check_branch
        %189 = sbr.rel (%p186) target = $region28
      $region27: #{tpu_custom_call.1} parent=5 // pred_region
        %s190 = ssub.s32 %s14, 1
        %s191 = sand.u32 %s50, 1
        %s192 = scalar_lea.sflag [#allocation3], %s191
        %s193 = sand.u32 %s50, 1
        %s194 = smul.addr %s193, 16
        %s195 = scalar_lea.vmem [#allocation2], %s194
        // Predicated region
        $region29: #{tpu_custom_call.1} parent=27 // pred_check
          %p196 = pneg %p63
        $region30: #{tpu_custom_call.1} parent=27 // pred_check_branch
          %198 = sbr.rel (%p196) target = $region32
        $region31: #{tpu_custom_call.1} parent=27 // pred_region
          %199 = dma.done %s192, 256
        $region32: #{tpu_custom_call.1} parent=27 // pred_fallthru
          _
        %s200 = sand.u32 %s80, 1
        %s201 = scalar_lea.sflag [#allocation5], %s200
        %s202 = sand.u32 %s80, 1
        %s203 = smul.addr %s202, 8
        %s204 = scalar_lea.vmem [#allocation4], %s203
        // Predicated region
        $region33: #{tpu_custom_call.1} parent=27 // pred_check
          %p205 = pneg %p93
        $region34: #{tpu_custom_call.1} parent=27 // pred_check_branch
          %207 = sbr.rel (%p205) target = $region36
        $region35: #{tpu_custom_call.1} parent=27 // pred_region
          %208 = dma.done %s201, 128
        $region36: #{tpu_custom_call.1} parent=27 // pred_fallthru
          _
        %s209 = sand.u32 %s50, 1
        %s210 = scalar_lea.sflag [#allocation3], %s209
        %s211 = sand.u32 %s50, 1
        %s212 = smul.addr %s211, 16
        %s213 = scalar_lea.vmem [#allocation2], %s212
        %p214 = pneg %p63
        %p215 = pneg %p60
        %s216 = sand.u32 %s80, 1
        %s217 = scalar_lea.sflag [#allocation5], %s216
        %s218 = sand.u32 %s80, 1
        %s219 = smul.addr %s218, 8
        %s220 = scalar_lea.vmem [#allocation4], %s219
        %p221 = pneg %p93
        %p222 = pneg %p90
        %p223 = pneg %p121
        %p224 = pneg %p118
        %p225 = scmp.lt.s32.totalorder %s24, 0
        %s226 = scalar_select %p225, %s24, 0
        %p227 = scmp.lt.s32.totalorder %s25, 1
        %s228 = scalar_select %p227, %s25, 1
        %s229 = smul.addr %s226, 2
        %s230 = sadd.s32 %s228, %s229
        %s231 = smul.addr %s230, 8
        %s232 = scalar_lea.vmem %s2, %s231
        %s233 = sadd.s32 %s24, %s26
        %s234 = smul.u32 2, %s233
        %s235 = sadd.s32 %s24, %s26
        %s236 = smul.u32 2, %s235
        %p237 = scmp.lt.s32.totalorder %s24, 0
        %s238 = scalar_select %p237, %s24, 0
        %p239 = scmp.lt.s32.totalorder %s25, 1
        %s240 = scalar_select %p239, %s25, 1
        %s241 = smul.addr %s238, 2
        %s242 = sadd.s32 %s240, %s241
        %s243 = smul.addr %s242, 8
        %s244 = scalar_lea.vmem %s2, %s243
        %p245 = scmp.eq.s32.totalorder %s26, 0
        // Predicated region
        $region37: #{tpu_custom_call.1} parent=27 // pred_check
          %p246 = pneg %p245
        $region38: #{tpu_custom_call.1} parent=27 // pred_check_branch
          %248 = sbr.rel (%p246) target = $region40
        $region39: #{tpu_custom_call.1} parent=27 // pred_region
          %vm249 = vcmask 31744
          %250 = vst.msk [vmem:[%s244] sm:$0xff] %vm249, 0.0
        $region40: #{tpu_custom_call.1} parent=27 // pred_fallthru
          _
        %v251 = vld [vmem:[%s244] sm:$0xff]
        %v252 = vld [vmem:[%s195] sm:$0xff]
        %v253 = vld [vmem:[%s195 + $0x8] sm:$0xff]
        %v254 = vld [vmem:[%s204] sm:$0xff]
        %v256 = vcombine.high %v254, %v254
        %258 = vmatprep.subr.mxu0 %v256
        %259 = vmatpush1.xpose.msra.mxu0 %v254
        %260 = vmatprep.subr.mxu0 0.0
        %261 = vmatpush1.xpose.msra.mxu0 0.0
        %262 = vmatprep.subr.mxu0 0.0
        %263 = vmatpush1.xpose.msra.mxu0 0.0
        %264 = vmatprep.subr.mxu0 0.0
        %265 = vmatpush1.xpose.msra.mxu0 0.0
        %266 = vmatprep.subr.mxu0 0.0
        %267 = vmatpush1.xpose.msra.mxu0 0.0
        %268 = vmatprep.subr.mxu0 0.0
        %269 = vmatpush1.xpose.msra.mxu0 0.0
        %270 = vmatprep.subr.mxu0 0.0
        %271 = vmatpush1.xpose.msra.mxu0 0.0
        %272 = vmatprep.subr.mxu0 0.0
        %273 = vmatpush1.xpose.msra.mxu0 0.0
        %274 = vmatprep.subr.mxu0 0.0
        %275 = vmatpush1.xpose.msra.mxu0 0.0
        %276 = vmatprep.subr.mxu0 0.0
        %277 = vmatpush1.xpose.msra.mxu0 0.0
        %278 = vmatprep.subr.mxu0 0.0
        %279 = vmatpush1.xpose.msra.mxu0 0.0
        %280 = vmatprep.subr.mxu0 0.0
        %281 = vmatpush1.xpose.msra.mxu0 0.0
        %282 = vmatprep.subr.mxu0 0.0
        %283 = vmatpush1.xpose.msra.mxu0 0.0
        %284 = vmatprep.subr.mxu0 0.0
        %285 = vmatpush1.xpose.msra.mxu0 0.0
        %286 = vmatprep.subr.mxu0 0.0
        %287 = vmatpush1.xpose.msra.mxu0 0.0
        %288 = vmatprep.subr.mxu0 0.0
        %289 = vmatpush1.xpose.msra.mxu0 0.0
        %290 = vmatprep.subr.mxu0 0.0
        %291 = vmatpush1.xpose.msra.mxu0 0.0
        %292 = vmatprep.subr.mxu0 0.0
        %293 = vmatpush1.xpose.msra.mxu0 0.0
        %294 = vmatprep.subr.mxu0 0.0
        %295 = vmatpush1.xpose.msra.mxu0 0.0
        %296 = vmatprep.subr.mxu0 0.0
        %297 = vmatpush1.xpose.msra.mxu0 0.0
        %298 = vmatprep.subr.mxu0 0.0
        %299 = vmatpush1.xpose.msra.mxu0 0.0
        %300 = vmatprep.subr.mxu0 0.0
        %301 = vmatpush1.xpose.msra.mxu0 0.0
        %302 = vmatprep.subr.mxu0 0.0
        %303 = vmatpush1.xpose.msra.mxu0 0.0
        %304 = vmatprep.subr.mxu0 0.0
        %305 = vmatpush1.xpose.msra.mxu0 0.0
        %306 = vmatprep.subr.mxu0 0.0
        %307 = vmatpush1.xpose.msra.mxu0 0.0
        %308 = vmatprep.subr.mxu0 0.0
        %309 = vmatpush1.xpose.msra.mxu0 0.0
        %310 = vmatprep.subr.mxu0 0.0
        %311 = vmatpush1.xpose.msra.mxu0 0.0
        %312 = vmatprep.subr.mxu0 0.0
        %313 = vmatpush1.xpose.msra.mxu0 0.0
        %314 = vmatprep.subr.mxu0 0.0
        %315 = vmatpush1.xpose.msra.mxu0 0.0
        %316 = vmatprep.subr.mxu0 0.0
        %317 = vmatpush1.xpose.msra.mxu0 0.0
        %318 = vmatprep.subr.mxu0 0.0
        %319 = vmatpush1.xpose.msra.mxu0 0.0
        %320 = vmatprep.subr.mxu0 0.0
        %321 = vmatpush1.xpose.msra.mxu0 0.0
        %322 = vmatprep.mubr.f32.mxu0 %v253
        %323 = vmatmul.mubr.f32.gmra.mrb[0].mxu0 %v252
        %v324 = vpop.f32.mrb[0].mxu0
        %v325 = vadd.f32 0.0, %v324
        %v326 = vpop.f32.mrb[0].mxu0
        %327 = vdwg.mxu0
        %v328 = vadd.f32 %v251, %v325
        %vm329 = vcmask 31744
        %330 = vst.msk [vmem:[%s244] sm:$0xff] %vm329, %v328
        %p331 = scmp.lt.s32.totalorder %s24, 0
        %s332 = scalar_select %p331, %s24, 0
        %p333 = scmp.lt.s32.totalorder %s25, 1
        %s334 = scalar_select %p333, %s25, 1
        %s335 = smul.addr %s332, 2
        %s336 = sadd.s32 %s334, %s335
        %s337 = smul.addr %s336, 8
        %s338 = scalar_lea.vmem %s2, %s337
        // Predicated region
        $region41: #{tpu_custom_call.1} parent=27 // pred_check
          %p339 = pneg %p118
        $region42: #{tpu_custom_call.1} parent=27 // pred_check_branch
          %341 = sbr.rel (%p339) target = $region44
        $region43: #{tpu_custom_call.1} parent=27 // pred_region
          _
        $region44: #{tpu_custom_call.1} parent=27 // pred_fallthru
          _
      $region28: #{tpu_custom_call.1} parent=5 // pred_fallthru
        _
      %p342 = scmp.le.s32.totalorder 2, %s14
      // Predicated region
      $region45: #{tpu_custom_call.1} parent=5 // pred_check
        %p343 = pneg %p342
      $region46: #{tpu_custom_call.1} parent=5 // pred_check_branch
        %345 = sbr.rel (%p343) target = $region48
      $region47: #{tpu_custom_call.1} parent=5 // pred_region
        %s346 = ssub.s32 %s14, 2
        // Predicated region
        $region49: #{tpu_custom_call.1} parent=47 // pred_check
          %p347 = pneg %p124
        $region50: #{tpu_custom_call.1} parent=47 // pred_check_branch
          %349 = sbr.rel (%p347) target = $region52
        $region51: #{tpu_custom_call.1} parent=47 // pred_region
          %p350 = scmp.lt.s32.totalorder %s27, 0
          %s351 = scalar_select %p350, %s27, 0
          %p352 = scmp.lt.s32.totalorder %s28, 1
          %s353 = scalar_select %p352, %s28, 1
          %s354 = smul.addr %s351, 2
          %s355 = sadd.s32 %s353, %s354
          %s356 = smul.addr %s355, 8
          %s357 = scalar_lea.vmem %s2, %s356
        $region52: #{tpu_custom_call.1} parent=47 // pred_fallthru
          _
      $region48: #{tpu_custom_call.1} parent=5 // pred_fallthru
        _
    $region6: #{tpu_custom_call.1} parent=1 // loop_footer
      %s18 = sadd.s32 1, %s14
    $region7: #{tpu_custom_call.1} parent=1 // loop_footer_branch
      %13 = sbr.rel target = $region3
    $region8: #{tpu_custom_call.1} parent=1 // loop_exit
      _
    %358 = vsyncpa [#allocation3], 1
    %s359 = scalar_lea.sflag [#allocation3], 1
    %360 = vsyncpa %s359, 1
    %361 = vsyncpa [#allocation5], 1
    %s362 = scalar_lea.sflag [#allocation5], 1
    %363 = vsyncpa %s362, 1

</llo_original>
